<compile_context>
chip_gen: v7x
topology: tpu7x:2x2x1
jax: 0.10.0
libtpu: 0.0.40
codegen_flags: <defaults>
</compile_context>

<pallas_src>
import functools

import jax
import jax.numpy as jnp
from jax.experimental import pallas as pl
from jax.experimental.pallas import tpu as pltpu


def _brelu_loss_kernel(x_ref, o_ref, acc_ref, *, num_full_blocks, tail_rows,
                       needs_gate, chunk_rows, num_chunks):
    """Accumulate sum(log1p(dist_outside_[0,1](x))) into an (acc_rows,128) partial."""
    p = pl.program_id(0)            # parallel axis (v7x TensorCore split)
    j = pl.program_id(1)            # streaming / reduction axis
    nj = pl.num_programs(1)
    lane = x_ref.shape[1]
    acc_rows = acc_ref.shape[0]
    block_idx = p * nj + j          # unclamped logical block index

    @pl.when(j == 0)
    def _():
        acc_ref[...] = jnp.zeros_like(acc_ref)

    def accumulate_chunk(x):
        # x: (chunk_rows, lane) f32.  Distance outside [0, 1], then log1p.
        d = jnp.maximum(jnp.maximum(x - 1.0, -x), 0.0)
        v = jnp.log1p(d)
        # Row reduction in sublane groups: acc_rows independent rows of
        # accumulation (pure VPU adds, no cross-lane work).
        acc_ref[...] += v.reshape(-1, acc_rows, lane).sum(axis=0)

    def full_chunk_body(c, carry):
        start = pl.multiple_of(c * chunk_rows, chunk_rows)
        accumulate_chunk(x_ref[pl.ds(start, chunk_rows), :].astype(jnp.float32))
        return carry

    def run_full_block():
        jax.lax.fori_loop(0, num_chunks, full_chunk_body, 0)

    # Steady state: full blocks, no per-element masking at all.
    if needs_gate:
        @pl.when(block_idx < num_full_blocks)
        def _():
            run_full_block()
    else:
        run_full_block()

    # Only the single possibly-ragged block gets a row mask.
    if tail_rows > 0:
        n_tail_chunks = pl.cdiv(tail_rows, chunk_rows)  # static

        def tail_chunk_body(c, carry):
            start = pl.multiple_of(c * chunk_rows, chunk_rows)
            rows = start + jax.lax.broadcasted_iota(jnp.int32, (chunk_rows, lane), 0)
            x = jnp.where(rows < tail_rows, x_ref[pl.ds(start, chunk_rows), :], 0)
            accumulate_chunk(x.astype(jnp.float32))
            return carry

        @pl.when(block_idx == num_full_blocks)
        def _():
            jax.lax.fori_loop(0, n_tail_chunks, tail_chunk_body, 0)

    @pl.when(j == nj - 1)
    def _():
        o_ref[0] = acc_ref[...]


def brelu_loss(img, loss_weight=1.0, *, block_bytes=None, lane=128,
               parallel_splits=None):
    """loss_weight * sum(log(|x - clamp(x, 0, 1)| + 1)) / numel(x)."""
    n = int(img.size)
    scale = float(loss_weight) / float(n)

    itemsize = jnp.dtype(img.dtype).itemsize
    # Sublane packing of the input dtype: 8 (f32), 16 (bf16), 32 (int8/fp8).
    packing = max(8, 32 // itemsize)

    # Chip-dependent defaults (single code path; only numbers change).
    kind = ""
    try:
        kind = jax.devices()[0].device_kind.lower()
    except Exception:
        pass
    if parallel_splits is None:
        # v7x: 2 TensorCores per chip -> shard the stream via the leading
        # "parallel" axis.  Single-TC v5e/v6e: keep 1 (avoid duplicate blocks).
        parallel_splits = 2 if "v7" in kind else 1
    if block_bytes is None:
        # Per-buffer DMA block bytes (double-buffered by the pipeline).
        block_bytes = (8 << 20) if ("v6" in kind or "v7" in kind) else (4 << 20)

    # Flatten in native dtype; padded zeros contribute exactly log1p(0) == 0.
    flat = img.reshape(-1)
    if n % lane != 0:
        flat = jnp.pad(flat, (0, lane - n % lane))
    num_rows = flat.shape[0] // lane
    if num_rows < packing:
        # Tiny-input corner case: pad rows up to one packed sublane tile.
        flat = jnp.pad(flat, (0, (packing - num_rows) * lane))
        num_rows = packing
    x2d = flat.reshape(num_rows, lane)

    # Compute-chunk rows (~512 KiB of f32 temporaries), multiple of packing.
    chunk_rows = max(packing, (512 * 1024) // (lane * 4))
    if num_rows >= chunk_rows:
        target_rows = max(
            chunk_rows,
            (block_bytes // (lane * itemsize)) // chunk_rows * chunk_rows)
        block_rows = min(target_rows, (num_rows // chunk_rows) * chunk_rows)
    else:
        block_rows = (num_rows // packing) * packing
        chunk_rows = block_rows
    num_chunks = block_rows // chunk_rows

    # Interleaved accumulator: acc_rows = 8*K rows -> K independent vreg chains.
    acc_rows = 64
    while chunk_rows % acc_rows != 0:
        acc_rows //= 2

    num_full_blocks = num_rows // block_rows
    tail_rows = num_rows - num_full_blocks * block_rows
    num_blocks = num_full_blocks + (1 if tail_rows else 0)

    p_axis = max(1, min(parallel_splits, num_blocks))
    steps = pl.cdiv(num_blocks, p_axis)
    # Gate compute only if there exist ragged or clamped-duplicate grid points.
    needs_gate = (p_axis * steps) > num_full_blocks

    def x_index_map(p, j):
        # Clamp so grid points past the last block stay in-bounds; their
        # compute is skipped by the scalar pl.when gates in the kernel.
        return (jnp.minimum(p * steps + j, num_blocks - 1), 0)

    partials = pl.pallas_call(
        functools.partial(
            _brelu_loss_kernel,
            num_full_blocks=num_full_blocks,
            tail_rows=tail_rows,
            needs_gate=needs_gate,
            chunk_rows=chunk_rows,
            num_chunks=num_chunks,
        ),
        out_shape=jax.ShapeDtypeStruct((p_axis, acc_rows, lane), jnp.float32),
        grid_spec=pltpu.PrefetchScalarGridSpec(
            num_scalar_prefetch=0,
            grid=(p_axis, steps),
            in_specs=[pl.BlockSpec((block_rows, lane), x_index_map)],
            out_specs=pl.BlockSpec((1, acc_rows, lane), lambda p, j: (p, 0, 0)),
            scratch_shapes=[pltpu.VMEM((acc_rows, lane), jnp.float32)],
        ),
        compiler_params=pltpu.CompilerParams(
            dimension_semantics=("parallel", "arbitrary"),
            vmem_limit_bytes=32 * 1024 * 1024,
        ),
    )(x2d)

    # Tiny final reduction of the per-core partials in plain JAX.
    return jnp.sum(partials) * scale


if __name__ == "__main__":
    key = jax.random.PRNGKey(0)
    # Values outside [0, 1] so the loss is nontrivial.
    x = jax.random.normal(key, (2, 4, 16, 16), dtype=jnp.float32) * 2.0

    loss = brelu_loss(x, loss_weight=1.0)
    loss = jax.block_until_ready(loss)

    bs, c, a, b = x.shape
    ref = jnp.sum(jnp.log(jnp.abs(x - jnp.clip(x, 0.0, 1.0)) + 1.0)) / (bs * c * a * b)
    assert jnp.allclose(loss, ref, rtol=1e-5, atol=1e-6), (loss, ref)

    # Second check: ragged shape (exercises the masked-tail / gated paths).
    key2 = jax.random.PRNGKey(1)
    y = jax.random.normal(key2, (3, 5, 17, 19), dtype=jnp.float32) * 2.0
    loss2 = jax.block_until_ready(brelu_loss(y, loss_weight=0.5))
    ref2 = 0.5 * jnp.sum(jnp.log(jnp.abs(y - jnp.clip(y, 0.0, 1.0)) + 1.0)) / y.size
    assert jnp.allclose(loss2, ref2, rtol=1e-5, atol=1e-6), (loss2, ref2)

    print("KERNEL_OK")
</pallas_src>

<mosaic_0001>
module attributes {stable_mosaic.version = 11 : i64} {
  func.func @_brelu_loss_kernel(%arg0: i32, %arg1: i32, %arg2: memref<16x128xf32, #tpu.memory_space<vmem>>, %arg3: memref<1x16x128xf32, #tpu.memory_space<vmem>>, %arg4: memref<16x128xf32, #tpu.memory_space<vmem>>) attributes {dimension_semantics = [#tpu.dimension_semantics<parallel>, #tpu.dimension_semantics<arbitrary>], iteration_bounds = array<i64: 1, 1>, scalar_prefetch = 0 : i64, scratch_operands = 1 : i64, tpu.core_type = #tpu.core_type<tc>, window_params = [{transform_indices = @transform_0, window_bounds = array<i64: 16, 128>}, {transform_indices = @transform_1, window_bounds = array<i64: 1, 16, 128>}]} {
    %c0_i32 = arith.constant 0 : i32
    %0 = arith.cmpi eq, %arg1, %c0_i32 : i32
    %1 = arith.extui %0 : i1 to i32
    %c0_i32_0 = arith.constant 0 : i32
    %2 = arith.cmpi ne, %1, %c0_i32_0 : i32
    scf.if %2 {
      %cst_11 = arith.constant 0.000000e+00 : f32
      %23 = vector.broadcast %cst_11 : f32 to vector<16x128xf32>
      %c0_12 = arith.constant 0 : index
      %c0_13 = arith.constant 0 : index
      %24 = vector.load %arg4[%c0_12, %c0_13] : memref<16x128xf32, #tpu.memory_space<vmem>>, vector<16x128xf32>
      tpu.vector_store %arg4[%c0_12, %c0_13], %23 {strides = array<i32>} : memref<16x128xf32, #tpu.memory_space<vmem>>, vector<16x128xf32>,
    } else {
    }
    %c0_i32_1 = arith.constant 0 : i32
    %c16_i32 = arith.constant 16 : i32
    %3 = arith.muli %c0_i32_1, %c16_i32 : i32
    %4 = tpu.assume_multiple %3, 16 : i32
    %5 = arith.index_cast %4 : i32 to index
    %c0 = arith.constant 0 : index
    %6 = vector.load %arg2[%5, %c0] : memref<16x128xf32, #tpu.memory_space<vmem>>, vector<16x128xf32>
    %cst = arith.constant 1.000000e+00 : f32
    %7 = vector.broadcast %cst : f32 to vector<16x128xf32>
    %8 = arith.subf %6, %7 : vector<16x128xf32>
    %cst_2 = arith.constant 0.000000e+00 : f32
    %9 = vector.broadcast %cst_2 : f32 to vector<16x128xf32>
    %10 = arith.subf %9, %6 : vector<16x128xf32>
    %11 = arith.maximumf %8, %10 : vector<16x128xf32>
    %cst_3 = arith.constant 0.000000e+00 : f32
    %12 = vector.broadcast %cst_3 : f32 to vector<16x128xf32>
    %13 = arith.maximumf %11, %12 : vector<16x128xf32>
    %14 = math.log1p %13 : vector<16x128xf32>
    %c0_4 = arith.constant 0 : index
    %c0_5 = arith.constant 0 : index
    %15 = vector.load %arg4[%c0_4, %c0_5] : memref<16x128xf32, #tpu.memory_space<vmem>>, vector<16x128xf32>
    %16 = vector.shape_cast %14 : vector<16x128xf32> to vector<1x16x128xf32>
    %cst_6 = arith.constant dense<0.000000e+00> : vector<16x128xf32>
    %17 = vector.multi_reduction <add>, %16, %cst_6 [0] : vector<1x16x128xf32> to vector<16x128xf32>
    %18 = arith.addf %15, %17 : vector<16x128xf32>
    %c0_7 = arith.constant 0 : index
    %c0_8 = arith.constant 0 : index
    %19 = vector.load %arg4[%c0_7, %c0_8] : memref<16x128xf32, #tpu.memory_space<vmem>>, vector<16x128xf32>
    tpu.vector_store %arg4[%c0_7, %c0_8], %18 {strides = array<i32>} : memref<16x128xf32, #tpu.memory_space<vmem>>, vector<16x128xf32>,
    %c1_i32 = arith.constant 1 : i32
    %c0_i32_9 = arith.constant 0 : i32
    %20 = arith.cmpi eq, %arg1, %c0_i32_9 : i32
    %21 = arith.extui %20 : i1 to i32
    %c0_i32_10 = arith.constant 0 : i32
    %22 = arith.cmpi ne, %21, %c0_i32_10 : i32
    scf.if %22 {
      %c0_11 = arith.constant 0 : index
      %c0_12 = arith.constant 0 : index
      %23 = vector.load %arg4[%c0_11, %c0_12] : memref<16x128xf32, #tpu.memory_space<vmem>>, vector<16x128xf32>
      %c0_13 = arith.constant 0 : index
      %c0_14 = arith.constant 0 : index
      %c0_15 = arith.constant 0 : index
      %24 = vector.load %arg3[%c0_13, %c0_14, %c0_15] : memref<1x16x128xf32, #tpu.memory_space<vmem>>, vector<1x16x128xf32>
      %25 = vector.shape_cast %24 : vector<1x16x128xf32> to vector<16x128xf32>
      %26 = vector.shape_cast %23 : vector<16x128xf32> to vector<1x16x128xf32>
      tpu.vector_store %arg3[%c0_13, %c0_14, %c0_15], %26 {strides = array<i32>} : memref<1x16x128xf32, #tpu.memory_space<vmem>>, vector<1x16x128xf32>,
    } else {
    }
    return
  }
  func.func @transform_0(%arg0: i32, %arg1: i32) -> (i32, i32) {
    %c1_i32 = arith.constant 1 : i32
    %0 = arith.muli %arg0, %c1_i32 : i32
    %1 = arith.addi %0, %arg1 : i32
    %c0_i32 = arith.constant 0 : i32
    %2 = arith.minsi %1, %c0_i32 : i32
    %c0_i32_0 = arith.constant 0 : i32
    %c0_i32_1 = arith.constant 0 : i32
    return %2, %c0_i32_0 : i32, i32
  }
  func.func @transform_1(%arg0: i32, %arg1: i32) -> (i32, i32, i32) {
    %c0_i32 = arith.constant 0 : i32
    %c0_i32_0 = arith.constant 0 : i32
    %c0_i32_1 = arith.constant 0 : i32
    return %arg0, %c0_i32, %c0_i32_0 : i32, i32, i32
  }
}

</mosaic_0001>

<llo_original>
// kernel: tpu_custom_call.1
$region0: #{tpu_custom_call.1}
  #allocation0 [shape = 'u32[]', space=smem, size = 0x4, offset = 0x4, fixed_abs, tag = 'smem constant byte address 0x4 - core index']
  #allocation1 [shape = 'u32[144,128]{1,0:T(1,128)}', space=vmem, size = 0x12000, scoped, tag = 'internal scratch']
  #allocation2 [shape = 'f32[16,128]{1,0:T(8,128)}', space=vmem, size = 0x2000, scoped, tag = 'scratch operand']
  %s0 = inlined_call_operand.hbm [shape: f32[16,128], index: 0, kind: input, shape index: {}]
  %s1 = inlined_call_operand.hbm [shape: f32[1,16,128], index: 1, kind: output, shape index: {}]
  %s2 = sld [smem:[#allocation0]]
  $region26: #{tpu_custom_call.1} parent=0
    _
  %s4 = ssub.s32 1, %s2
  %s5 = scalar_select 0, %s4, %s2
  $region1: #{tpu_custom_call.1} parent=0
    #allocation3 [shape = 'u8[8192]{0}', space=vmem, size = 0x2000, scoped, tag = 'input window, operand 0, single buffered']
    #allocation4 [shape = 's32[1]{0}', space=sflag, size = 0x4, scoped, tag = 'scoped memory for tpu_custom_call.1']
    #allocation5 [shape = 's32[1]{0}', space=sflag, size = 0x4, scoped, tag = 'scoped memory for tpu_custom_call.1']
    #allocation6 [shape = 'u8[8192]{0}', space=vmem, size = 0x2000, scoped, tag = 'output window, operand 0, single buffered']
    %6 = vsyncpa [#allocation4], 0
    %7 = vsyncpa [#allocation5], 0
    // Predicated region
    $region2: #{tpu_custom_call.1} parent=1 // pred_check
      _
    $region3: #{tpu_custom_call.1} parent=1 // pred_check_branch
      %9 = sbr.rel (0) target = $region5
    $region4: #{tpu_custom_call.1} parent=1 // pred_region
      %s10 = sadd.s32 0, 0
      %p11 = scmp.lt.s32.totalorder %s10, 0
      %s12 = scalar_select %p11, %s10, 0
      %s13 = smul.u32 2, %s12
      %s15 = ssub.s32 256, 256
      %16 = vsyncadd [#allocation4], %s15
      %s17 = smul.addr %s13, 128
      %s18 = scalar_lea.hbm %s0, %s17
      %s19 = sshll.u32 [#allocation3], 4
      %s20 = int_to_ptr.vmem [resolvable:$true] %s19
      %25 = dma.hbm_to_vmem [thread:$0]  %s18, 256, %s20, [#allocation4], 128, 128, 8
    $region5: #{tpu_custom_call.1} parent=1 // pred_fallthru
      _
    // Predicated region
    $region6: #{tpu_custom_call.1} parent=1 // pred_check
      _
    $region7: #{tpu_custom_call.1} parent=1 // pred_check_branch
      %27 = sbr.rel (0) target = $region9
    $region8: #{tpu_custom_call.1} parent=1 // pred_region
      %28 = dma.done [#allocation4], 256
    $region9: #{tpu_custom_call.1} parent=1 // pred_fallthru
      _
    %s29 = sadd.s32 0, 0
    %p30 = scmp.lt.s32.totalorder %s29, 0
    %s31 = scalar_select %p30, %s29, 0
    %s32 = smul.u32 2, %s31
    %p33 = scmp.eq.s32.totalorder 0, 0
    // Predicated region
    $region10: #{tpu_custom_call.1} parent=1 // pred_check
      %p34 = pneg %p33
    $region11: #{tpu_custom_call.1} parent=1 // pred_check_branch
      %36 = sbr.rel (%p34) target = $region13
    $region12: #{tpu_custom_call.1} parent=1 // pred_region
      %37 = vst [vmem:[#allocation2] sm:$0xff] 0.0
      %38 = vst [vmem:[#allocation2 + $0x8] sm:$0xff] 0.0
    $region13: #{tpu_custom_call.1} parent=1 // pred_fallthru
      _
    %v39 = vld [vmem:[#allocation3] sm:$0xff]
    %v40 = vld [vmem:[#allocation3 + $0x8] sm:$0xff]
    %v41 = vsub.f32 %v39, 1.0
    %v42 = vsub.f32 %v40, 1.0
    %v43 = vsub.f32 0.0, %v39
    %v44 = vsub.f32 0.0, %v40
    %v45 = vmax.f32 %v41, %v43
    %v46 = vmax.f32 %v42, %v44
    %v47 = vmax.f32 %v45, 0.0
    %v48 = vmax.f32 %v46, 0.0
    %v49 = vadd.f32 %v47, 1.0
    %v50 = vlog2.pop %v49
    %v51 = vmul.f32 %v50, 0.6931472
    %v52 = vmul.f32 -0.5, %v47
    %v53 = vadd.f32 %v52, 1.0
    %v54 = vmul.f32 %v53, %v47
    %v55 = vand.u32 2147483647, %v47
    %vm56 = vcmp.lt.f32.partialorder %v55, 0.0004427343
    %v57 = vsel %vm56, %v54, %v51
    %v58 = vadd.f32 %v48, 1.0
    %v59 = vlog2.pop %v58
    %v60 = vmul.f32 %v59, 0.6931472
    %v61 = vmul.f32 -0.5, %v48
    %v62 = vadd.f32 %v61, 1.0
    %v63 = vmul.f32 %v62, %v48
    %v64 = vand.u32 2147483647, %v48
    %vm65 = vcmp.lt.f32.partialorder %v64, 0.0004427343
    %v66 = vsel %vm65, %v63, %v60
    %v67 = vld [vmem:[#allocation2] sm:$0xff]
    %v68 = vld [vmem:[#allocation2 + $0x8] sm:$0xff]
    %v69 = vadd.f32 %v57, 0.0
    %v70 = vadd.f32 %v66, 0.0
    %v71 = vadd.f32 %v67, %v69
    %v72 = vadd.f32 %v68, %v70
    %73 = vst [vmem:[#allocation2] sm:$0xff] %v71
    %74 = vst [vmem:[#allocation2 + $0x8] sm:$0xff] %v72
    // Predicated region
    $region14: #{tpu_custom_call.1} parent=1 // pred_check
      %p75 = pneg %p33
    $region15: #{tpu_custom_call.1} parent=1 // pred_check_branch
      %77 = sbr.rel (%p75) target = $region17
    $region16: #{tpu_custom_call.1} parent=1 // pred_region
      %v78 = vld [vmem:[#allocation2] sm:$0xff]
      %v79 = vld [vmem:[#allocation2 + $0x8] sm:$0xff]
      %80 = vst [vmem:[#allocation6] sm:$0xff] %v78
      %81 = vst [vmem:[#allocation6 + $0x8] sm:$0xff] %v79
    $region17: #{tpu_custom_call.1} parent=1 // pred_fallthru
      _
    // Predicated region
    $region18: #{tpu_custom_call.1} parent=1 // pred_check
      _
    $region19: #{tpu_custom_call.1} parent=1 // pred_check_branch
      %83 = sbr.rel (0) target = $region21
    $region20: #{tpu_custom_call.1} parent=1 // pred_region
      %s85 = ssub.s32 256, 256
      %86 = vsyncadd [#allocation5], %s85
      %s87 = sshll.u32 [#allocation6], 4
      %s88 = int_to_ptr.vmem [resolvable:$true] %s87
      %93 = dma.vmem_to_hbm [thread:$0]  %s88, 256, %s1, [#allocation5], 128, 128, 8
    $region21: #{tpu_custom_call.1} parent=1 // pred_fallthru
      _
    // Predicated region
    $region22: #{tpu_custom_call.1} parent=1 // pred_check
      _
    $region23: #{tpu_custom_call.1} parent=1 // pred_check_branch
      %95 = sbr.rel (0) target = $region25
    $region24: #{tpu_custom_call.1} parent=1 // pred_region
      %96 = dma.done [#allocation5], 256
    $region25: #{tpu_custom_call.1} parent=1 // pred_fallthru
      _
    %97 = vsyncpa [#allocation4], 1
    %98 = vsyncpa [#allocation5], 1

</llo_original>
